<compile_context>
chip_gen: v6e
topology: v6e:2x2x1
jax: 0.10.0
libtpu: 0.0.40
codegen_flags: <defaults>
</compile_context>

<pallas_src>
import functools
import math

import numpy as np
import jax
import jax.numpy as jnp
from jax.experimental import pallas as pl
from jax.experimental.pallas import tpu as pltpu


# ----------------------------------------------------------------------------
# Host-side setup (glue): Clenshaw-Curtis quadrature + distribution icdfs.
# ----------------------------------------------------------------------------
def compute_clenshaw_curtis(N):
    """Quadrature rule for approximating int_{-1}^{1} f(x) dx = sum_i w[i] f(x[i])."""
    lam = np.arange(0, N + 1, 1).reshape(-1, 1).astype(np.float64)
    lam = np.cos(lam @ lam.T * math.pi / N)
    lam[:, 0] = 0.5
    lam[:, -1] = 0.5 * lam[:, -1]
    lam = lam * 2.0 / N
    W = np.arange(0, N + 1, 1).reshape(-1, 1)
    W[np.arange(1, N + 1, 2)] = 0
    W = 2.0 / (1.0 - W ** 2)
    W[0] = 1.0
    W[np.arange(1, N + 1, 2)] = 0.0
    weights = lam.T @ W
    points = np.cos(np.arange(0, N + 1, 1).reshape(-1, 1) * math.pi / N)
    return weights, points


def transform_points(weights, points, a=-1.0, b=1.0):
    """Transform quadrature points from domain [-1, 1] to [a, b]."""
    weights = weights * (b - a) / 2.0
    points = (b - a) / 2.0 * points + (a + b) / 2.0
    return weights, points


# ----------------------------------------------------------------------------
# Pallas kernel
# ----------------------------------------------------------------------------
def _pow_int_nonneg(base, n):
    """base**n for integer n >= 1, exponentiation-by-squaring unrolled at trace time (VPU muls only)."""
    result = None
    acc = base
    e = n
    while e > 0:
        if e & 1:
            result = acc if result is None else result * acc
        acc = acc * acc
        e >>= 1
    return result


def _wasserstein_kernel(nuq_ref, x_ref, w_ref, c_ref, out_ref, *, p, n_coeff, tile_b):
    nuq = nuq_ref[...]                   # (tile_b, LANES) per-row nu.icdf(q)
    x = x_ref[...]                       # (1, LANES) shared quadrature points (VMEM-resident)
    w = w_ref[...]                       # (1, LANES) shared quadrature weights (VMEM-resident)
    c = c_ref[...]                       # (tile_b, K)  per-row T coefficients (single read)

    lanes = x.shape[1]
    # Hoisted broadcasts: JAX does not CSE broadcast_in_dim, so emit each exactly once.
    xb = jnp.broadcast_to(x, (tile_b, lanes))
    cb = [jnp.broadcast_to(c[:, k:k + 1], (tile_b, lanes)) for k in range(n_coeff)]

    # T.forward(x): per-row polynomial in monomial basis, evaluated by Horner.
    tx = cb[n_coeff - 1]
    for k in range(n_coeff - 2, -1, -1):           # static, tiny unrolled loop
        tx = tx * xb + cb[k]

    d = nuq - tx                                   # icdf_nu - T(x)

    # |d|^p with integer-p specialization: pure VPU multiplies, no EUP exp/log.
    if float(p).is_integer() and p >= 1.0:
        p_int = int(p)
        if p_int % 2 == 0:
            ix = _pow_int_nonneg(d * d, p_int // 2)    # p=2 -> d*d, no abs needed
        else:
            ix = _pow_int_nonneg(jnp.abs(d), p_int)
        # Padded lanes: fill values are finite and w == 0 there, so w*ix is exactly 0.
        contrib = w * ix
    else:
        ix = jnp.abs(d) ** p                           # general (non-integer) fallback
        contrib = jnp.where(w != 0.0, w * ix, 0.0)     # guard against 0 * inf from pow

    # Quadrature dot(w, Ix): VPU mul + XLU lane-reduce (kept off the MXU).
    s = jnp.sum(contrib, axis=1, keepdims=True)        # (tile_b, 1)
    s = jnp.maximum(s, 0.0)                            # clamp against tiny negative roundoff

    if p == 2.0:
        r = jnp.sqrt(s)
    elif p == 1.0:
        r = s
    else:
        r = s ** (1.0 / p)

    # Lane-dense 128-wide output store (unmasked vst); host reads column 0.
    out_ref[...] = jnp.broadcast_to(r, out_ref.shape)


def _pick_tile_b(B, lanes, K):
    """Largest multiple-of-8 batch tile dividing B, capped by a conservative VMEM budget."""
    # Per-tile streamed VMEM (double-buffered): nu_icdf block + output block + coeff block.
    # Resident x/w blocks are a constant ~2*lanes*4 bytes and ignored here.
    bytes_per_row = 4 * (lanes + 128 + K)
    budget = 8 << 20                      # conservative vs. v7x's 64 MiB phys / 32 MiB scoped VMEM
    cap = max(8, (budget // (2 * bytes_per_row)) // 8 * 8)
    best = 8
    t = 8
    while t <= min(B, cap):
        if B % t == 0:
            best = t
        t += 8
    # Keep >= 2 grid steps when B allows, so v7x's second TensorCore is not left idle;
    # the extra ~0.35 us step is noise on single-TC v5e/v6e.
    if best == B and (B // 2) % 8 == 0:
        best = B // 2
    return best


def one_dim_monotone_wasserstein(nu_icdf, x_shared, w_shared, coeffs, p, *, tile_b=None):
    """Batched Wasserstein-p distances.

    nu_icdf  : (B, LANES) float32   per-row nu.icdf(q), padded lanes finite (e.g. 0)
    x_shared : (1, LANES) float32   shared eta.icdf(q) quadrature points, padded lanes finite
    w_shared : (1, LANES) float32   shared quadrature weights, zero on padded lanes
    coeffs   : (B, K)     float32   per-row transport-map coefficients (monomial basis)
    returns  : (B,)       float32
    """
    B, lanes = nu_icdf.shape
    K = coeffs.shape[1]
    assert lanes % 128 == 0
    assert x_shared.shape == (1, lanes) and w_shared.shape == (1, lanes)
    if tile_b is None:
        tile_b = _pick_tile_b(B, lanes, K)
    assert B % tile_b == 0 and tile_b % 8 == 0

    kernel = functools.partial(
        _wasserstein_kernel, p=float(p), n_coeff=int(K), tile_b=int(tile_b))
    out = pl.pallas_call(
        kernel,
        out_shape=jax.ShapeDtypeStruct((B, 128), jnp.float32),
        grid=(B // tile_b,),
        in_specs=[
            pl.BlockSpec((tile_b, lanes), lambda i: (i, 0)),   # per-row nu_icdf (streamed)
            pl.BlockSpec((1, lanes), lambda i: (0, 0)),        # shared x: same block every step -> resident
            pl.BlockSpec((1, lanes), lambda i: (0, 0)),        # shared w: same block every step -> resident
            pl.BlockSpec((tile_b, K), lambda i: (i, 0)),       # per-row T coefficients (last dim = full dim)
        ],
        out_specs=pl.BlockSpec((tile_b, 128), lambda i: (i, 0)),
        compiler_params=pltpu.CompilerParams(
            dimension_semantics=("parallel",)),                # shards batch tiles across TCs on v7x
    )(nu_icdf, x_shared, w_shared, coeffs)
    return out[:, 0]


# ----------------------------------------------------------------------------
# Driver
# ----------------------------------------------------------------------------
if __name__ == "__main__":
    N = 32          # Clenshaw-Curtis intervals -> N-1 interior points per evaluation
    p = 2.0         # Wasserstein-p
    B = 16          # batch of independent (nu, T) pairs
    LANES = 128     # lane-aligned padding of the point axis
    DEGREE = 3      # T cubic in the monomial basis [1, x, x^2, x^3]

    # Quadrature on [0, 1], keep interior points (matches module __init__).
    w_np, q_np = compute_clenshaw_curtis(N)
    w_np, q_np = transform_points(w_np, q_np, a=0.0, b=1.0)
    w_np = w_np[1:-1]            # (N-1, 1)
    q_np = q_np[1:-1]            # (N-1, 1)

    # eta = Normal(0, 1): x = eta.icdf(q) via ndtri; inf filter from __init__ (no-op here).
    q_j = jnp.asarray(q_np[:, 0], dtype=jnp.float32)
    x_np = np.asarray(jax.scipy.special.ndtri(q_j), dtype=np.float64)
    finite = np.isfinite(x_np)
    x_np = x_np[finite]
    w_flat = w_np[:, 0][finite]
    M = x_np.shape[0]

    # B independent problems: nu_b = Normal(mu_b, sigma_b), T_b a random cubic map.
    key = jax.random.PRNGKey(0)
    k1, k2, k3 = jax.random.split(key, 3)
    mus = np.asarray(jax.random.uniform(k1, (B,), minval=-1.0, maxval=2.0), dtype=np.float64)
    sigmas = np.asarray(jax.random.uniform(k2, (B,), minval=0.5, maxval=2.5), dtype=np.float64)
    coeffs_np = np.asarray(jax.random.normal(k3, (B, DEGREE + 1)), dtype=np.float64) * 0.5
    coeffs_np[:, 1] += 1.0       # keep maps roughly monotone increasing

    nu_icdf_np = mus[:, None] + sigmas[:, None] * x_np[None, :]   # (B, M): nu_b.icdf(q)

    # Shared (1, LANES) quadrature arrays; padded lanes carry finite points and zero weight.
    x_in = np.zeros((1, LANES), dtype=np.float32)
    x_in[0, :M] = x_np
    w_in = np.zeros((1, LANES), dtype=np.float32)
    w_in[0, :M] = w_flat

    # Per-row (B, LANES) nu icdf values; padded lanes finite (zero) so w*ix is exactly zero.
    nu_in = np.zeros((B, LANES), dtype=np.float32)
    nu_in[:, :M] = nu_icdf_np

    nu_in = jnp.asarray(nu_in)
    x_in = jnp.asarray(x_in)
    w_in = jnp.asarray(w_in)
    c_in = jnp.asarray(coeffs_np, dtype=jnp.float32)

    dist = one_dim_monotone_wasserstein(nu_in, x_in, w_in, c_in, p)
    dist = np.asarray(jax.block_until_ready(dist))

    # Pure-numpy reference check of the forward pass (per batch row).
    for b in range(B):
        tx_ref = np.polyval(coeffs_np[b][::-1], x_np)
        ix_ref = np.abs(nu_icdf_np[b] - tx_ref) ** p
        ref = float(np.dot(w_flat, ix_ref) ** (1.0 / p))
        assert np.isfinite(float(dist[b]))
        assert abs(float(dist[b]) - ref) < 1e-4 * max(1.0, abs(ref)), (b, float(dist[b]), ref)

    print("KERNEL_OK")
</pallas_src>

<mosaic_0001>
module attributes {stable_mosaic.version = 11 : i64} {
  func.func @_wasserstein_kernel(%arg0: i32, %arg1: memref<8x128xf32, #tpu.memory_space<vmem>>, %arg2: memref<1x128xf32, #tpu.memory_space<vmem>>, %arg3: memref<1x128xf32, #tpu.memory_space<vmem>>, %arg4: memref<8x4xf32, #tpu.memory_space<vmem>>, %arg5: memref<8x128xf32, #tpu.memory_space<vmem>>) attributes {dimension_semantics = [#tpu.dimension_semantics<parallel>], iteration_bounds = array<i64: 2>, scalar_prefetch = 0 : i64, scratch_operands = 0 : i64, tpu.core_type = #tpu.core_type<tc>, window_params = [{transform_indices = @transform_0, window_bounds = array<i64: 8, 128>}, {pipeline_mode = #tpu.pipeline_mode<synchronous>, transform_indices = @transform_1, window_bounds = array<i64: 1, 128>}, {pipeline_mode = #tpu.pipeline_mode<synchronous>, transform_indices = @transform_2, window_bounds = array<i64: 1, 128>}, {transform_indices = @transform_3, window_bounds = array<i64: 8, 4>}, {transform_indices = @transform_4, window_bounds = array<i64: 8, 128>}]} {
    %c0 = arith.constant 0 : index
    %c0_0 = arith.constant 0 : index
    %0 = vector.load %arg1[%c0, %c0_0] : memref<8x128xf32, #tpu.memory_space<vmem>>, vector<8x128xf32>
    %c0_1 = arith.constant 0 : index
    %c0_2 = arith.constant 0 : index
    %1 = vector.load %arg2[%c0_1, %c0_2] : memref<1x128xf32, #tpu.memory_space<vmem>>, vector<1x128xf32>
    %c0_3 = arith.constant 0 : index
    %c0_4 = arith.constant 0 : index
    %2 = vector.load %arg3[%c0_3, %c0_4] : memref<1x128xf32, #tpu.memory_space<vmem>>, vector<1x128xf32>
    %c0_5 = arith.constant 0 : index
    %c0_6 = arith.constant 0 : index
    %3 = vector.load %arg4[%c0_5, %c0_6] : memref<8x4xf32, #tpu.memory_space<vmem>>, vector<8x4xf32>
    %4 = vector.shape_cast %1 : vector<1x128xf32> to vector<1x128xf32>
    %5 = vector.broadcast %4 : vector<1x128xf32> to vector<8x128xf32>
    %6 = vector.extract_strided_slice %3 {offsets = [0, 0], sizes = [8, 1], strides = [1, 1]} : vector<8x4xf32> to vector<8x1xf32>
    %7 = vector.shape_cast %6 : vector<8x1xf32> to vector<8x1xf32>
    %8 = vector.broadcast %7 : vector<8x1xf32> to vector<8x128xf32>
    %9 = vector.extract_strided_slice %3 {offsets = [0, 1], sizes = [8, 1], strides = [1, 1]} : vector<8x4xf32> to vector<8x1xf32>
    %10 = vector.shape_cast %9 : vector<8x1xf32> to vector<8x1xf32>
    %11 = vector.broadcast %10 : vector<8x1xf32> to vector<8x128xf32>
    %12 = vector.extract_strided_slice %3 {offsets = [0, 2], sizes = [8, 1], strides = [1, 1]} : vector<8x4xf32> to vector<8x1xf32>
    %13 = vector.shape_cast %12 : vector<8x1xf32> to vector<8x1xf32>
    %14 = vector.broadcast %13 : vector<8x1xf32> to vector<8x128xf32>
    %15 = vector.extract_strided_slice %3 {offsets = [0, 3], sizes = [8, 1], strides = [1, 1]} : vector<8x4xf32> to vector<8x1xf32>
    %16 = vector.shape_cast %15 : vector<8x1xf32> to vector<8x1xf32>
    %17 = vector.broadcast %16 : vector<8x1xf32> to vector<8x128xf32>
    %18 = arith.mulf %17, %5 : vector<8x128xf32>
    %19 = arith.addf %18, %14 : vector<8x128xf32>
    %20 = arith.mulf %19, %5 : vector<8x128xf32>
    %21 = arith.addf %20, %11 : vector<8x128xf32>
    %22 = arith.mulf %21, %5 : vector<8x128xf32>
    %23 = arith.addf %22, %8 : vector<8x128xf32>
    %24 = arith.subf %0, %23 : vector<8x128xf32>
    %25 = arith.mulf %24, %24 : vector<8x128xf32>
    %26 = vector.broadcast %2 : vector<1x128xf32> to vector<8x128xf32>
    %27 = arith.mulf %26, %25 : vector<8x128xf32>
    %cst = arith.constant dense<0.000000e+00> : vector<8xf32>
    %28 = vector.multi_reduction <add>, %27, %cst [1] : vector<8x128xf32> to vector<8xf32>
    %29 = vector.shape_cast %28 : vector<8xf32> to vector<8x1xf32>
    %cst_7 = arith.constant 0.000000e+00 : f32
    %30 = vector.broadcast %cst_7 : f32 to vector<8x1xf32>
    %31 = arith.maximumf %29, %30 : vector<8x1xf32>
    %32 = math.sqrt %31 : vector<8x1xf32>
    %33 = vector.shape_cast %32 : vector<8x1xf32> to vector<8x1xf32>
    %34 = vector.broadcast %33 : vector<8x1xf32> to vector<8x128xf32>
    %c0_8 = arith.constant 0 : index
    %c0_9 = arith.constant 0 : index
    %35 = vector.load %arg5[%c0_8, %c0_9] : memref<8x128xf32, #tpu.memory_space<vmem>>, vector<8x128xf32>
    tpu.vector_store %arg5[%c0_8, %c0_9], %34 {strides = array<i32>} : memref<8x128xf32, #tpu.memory_space<vmem>>, vector<8x128xf32>,
    return
  }
  func.func @transform_0(%arg0: i32) -> (i32, i32) {
    %c0_i32 = arith.constant 0 : i32
    %c0_i32_0 = arith.constant 0 : i32
    return %arg0, %c0_i32 : i32, i32
  }
  func.func @transform_1(%arg0: i32) -> (i32, i32) {
    %c0_i32 = arith.constant 0 : i32
    %c0_i32_0 = arith.constant 0 : i32
    %c0_i32_1 = arith.constant 0 : i32
    return %c0_i32, %c0_i32_0 : i32, i32
  }
  func.func @transform_2(%arg0: i32) -> (i32, i32) {
    %c0_i32 = arith.constant 0 : i32
    %c0_i32_0 = arith.constant 0 : i32
    %c0_i32_1 = arith.constant 0 : i32
    return %c0_i32, %c0_i32_0 : i32, i32
  }
  func.func @transform_3(%arg0: i32) -> (i32, i32) {
    %c0_i32 = arith.constant 0 : i32
    %c0_i32_0 = arith.constant 0 : i32
    return %arg0, %c0_i32 : i32, i32
  }
  func.func @transform_4(%arg0: i32) -> (i32, i32) {
    %c0_i32 = arith.constant 0 : i32
    %c0_i32_0 = arith.constant 0 : i32
    return %arg0, %c0_i32 : i32, i32
  }
}

</mosaic_0001>

<llo_original>
// kernel: tpu_custom_call.1
$region0: #{tpu_custom_call.1}
  #allocation0 [shape = 'u32[]', space=smem, size = 0x4, offset = 0x4, fixed_abs, tag = 'smem constant byte address 0x4 - core index']
  #allocation1 [shape = 'u32[144,128]{1,0:T(1,128)}', space=vmem, size = 0x12000, scoped, tag = 'internal scratch']
  %s0 = inlined_call_operand.vmem [shape: f32[16,128], index: 0, kind: input, shape index: {}]
  %s1 = inlined_call_operand.vmem [shape: f32[1,128], index: 1, kind: input, shape index: {}]
  %s2 = inlined_call_operand.vmem [shape: f32[1,128], index: 2, kind: input, shape index: {}]
  %s3 = inlined_call_operand.vmem [shape: f32[16,4], index: 3, kind: input, shape index: {}]
  %s4 = inlined_call_operand.hbm [shape: f32[16,128], index: 4, kind: output, shape index: {}]
  %s5 = sld [smem:[#allocation0]]
  $region49: #{tpu_custom_call.1} parent=0
    _
  %s7 = ssub.s32 1, %s5
  %s8 = scalar_select 0, %s7, %s5
  $region1: #{tpu_custom_call.1} parent=0
    #allocation2 [shape = 'u8[8192]{0}', space=vmem, size = 0x2000, scoped, tag = 'output window, operand 0']
    #allocation3 [shape = 's32[2]{0}', space=sflag, size = 0x8, scoped, tag = 'scoped memory for tpu_custom_call.1']
    %9 = vsyncpa [#allocation3], 0
    %s10 = scalar_lea.sflag [#allocation3], 1
    %11 = vsyncpa %s10, 0
    loop: start=0, step=1, limit=4
    $region2: #{tpu_custom_call.1} parent=1 // loop_pre_header
      _
    $region3: #{tpu_custom_call.1} parent=1 // loop_header
      %s13 = sphi 0, %s17
      %p14 = scmp.ge.s32.totalorder %s13, 4
      %s23 = sphi 0, %s25
      %s26 = sphi 0, %s23
      %s27 = sphi 0, %s26
      %s43 = sphi 0, %s27
      %s47 = sphi 0, %s47
      %s49 = sphi 0, %s47
      %s50 = sphi 0, %s49
      %s64 = sphi 0, %s50
      %s68 = sphi 0, %s68
      %s70 = sphi 0, %s68
      %s71 = sphi 0, %s70
      %s85 = sphi 0, %s71
      %s91 = sphi 0, %s93
      %s94 = sphi 0, %s91
      %s95 = sphi 0, %s94
      %s111 = sphi 0, %s95
      %s117 = sphi 0, %s119
      %s120 = sphi 0, %s117
      %s121 = sphi 0, %s120
      %s137 = sphi 0, %s121
    $region4: #{tpu_custom_call.1} parent=1 // loop_header_branch
      %16 = sbr.rel (%p14) target = $region8
    $region5: #{tpu_custom_call.1} parent=1 // loop_body
      %s18 = ssub.s32 %s13, 1
      %s19 = ssub.s32 %s13, 2
      %s20 = sadd.s32 %s13, 1
      %s21 = ssub.s32 %s13, %s20
      %p22 = scmp.eq.s32.totalorder %s21, 0
      %s24 = sadd.s32 %s23, 1
      %s25 = scalar_select %p22, %s23, %s24
      %p28 = pneg %p22
      %p29 = scmp.eq.s32.totalorder %s13, 1
      %p30 = por %p28, %p29
      %p31 = scmp.ne.s32.totalorder %s23, %s26
      %p32 = scmp.eq.s32.totalorder %s13, 0
      %p33 = por %p31, %p32
      %p34 = scmp.ne.s32.totalorder %s23, %s26
      %p35 = scmp.eq.s32.totalorder %s18, 1
      %p36 = por %p34, %p35
      %p37 = scmp.ne.s32.totalorder %s26, %s27
      %p38 = scmp.eq.s32.totalorder %s18, 0
      %p39 = por %p37, %p38
      %p40 = scmp.ne.s32.totalorder %s26, %s27
      %p41 = scmp.eq.s32.totalorder %s19, 1
      %p42 = por %p40, %p41
      %p44 = scmp.ne.s32.totalorder %s27, %s43
      %p45 = scmp.eq.s32.totalorder %s19, 0
      %p46 = por %p44, %p45
      %s48 = sadd.s32 %s47, 1
      %p51 = scmp.eq.s32.totalorder %s13, 1
      %p52 = scmp.ne.s32.totalorder %s47, %s49
      %p53 = scmp.eq.s32.totalorder %s13, 0
      %p54 = por %p52, %p53
      %p55 = scmp.ne.s32.totalorder %s47, %s49
      %p56 = scmp.eq.s32.totalorder %s18, 1
      %p57 = por %p55, %p56
      %p58 = scmp.ne.s32.totalorder %s49, %s50
      %p59 = scmp.eq.s32.totalorder %s18, 0
      %p60 = por %p58, %p59
      %p61 = scmp.ne.s32.totalorder %s49, %s50
      %p62 = scmp.eq.s32.totalorder %s19, 1
      %p63 = por %p61, %p62
      %p65 = scmp.ne.s32.totalorder %s50, %s64
      %p66 = scmp.eq.s32.totalorder %s19, 0
      %p67 = por %p65, %p66
      %s69 = sadd.s32 %s68, 1
      %p72 = scmp.eq.s32.totalorder %s13, 1
      %p73 = scmp.ne.s32.totalorder %s68, %s70
      %p74 = scmp.eq.s32.totalorder %s13, 0
      %p75 = por %p73, %p74
      %p76 = scmp.ne.s32.totalorder %s68, %s70
      %p77 = scmp.eq.s32.totalorder %s18, 1
      %p78 = por %p76, %p77
      %p79 = scmp.ne.s32.totalorder %s70, %s71
      %p80 = scmp.eq.s32.totalorder %s18, 0
      %p81 = por %p79, %p80
      %p82 = scmp.ne.s32.totalorder %s70, %s71
      %p83 = scmp.eq.s32.totalorder %s19, 1
      %p84 = por %p82, %p83
      %p86 = scmp.ne.s32.totalorder %s71, %s85
      %p87 = scmp.eq.s32.totalorder %s19, 0
      %p88 = por %p86, %p87
      %s89 = ssub.s32 %s13, %s20
      %p90 = scmp.eq.s32.totalorder %s89, 0
      %s92 = sadd.s32 %s91, 1
      %s93 = scalar_select %p90, %s91, %s92
      %p96 = pneg %p90
      %p97 = scmp.eq.s32.totalorder %s13, 1
      %p98 = por %p96, %p97
      %p99 = scmp.ne.s32.totalorder %s91, %s94
      %p100 = scmp.eq.s32.totalorder %s13, 0
      %p101 = por %p99, %p100
      %p102 = scmp.ne.s32.totalorder %s91, %s94
      %p103 = scmp.eq.s32.totalorder %s18, 1
      %p104 = por %p102, %p103
      %p105 = scmp.ne.s32.totalorder %s94, %s95
      %p106 = scmp.eq.s32.totalorder %s18, 0
      %p107 = por %p105, %p106
      %p108 = scmp.ne.s32.totalorder %s94, %s95
      %p109 = scmp.eq.s32.totalorder %s19, 1
      %p110 = por %p108, %p109
      %p112 = scmp.ne.s32.totalorder %s95, %s111
      %p113 = scmp.eq.s32.totalorder %s19, 0
      %p114 = por %p112, %p113
      %s115 = ssub.s32 %s13, %s20
      %p116 = scmp.eq.s32.totalorder %s115, 0
      %s118 = sadd.s32 %s117, 1
      %s119 = scalar_select %p116, %s117, %s118
      %p122 = pneg %p116
      %p123 = scmp.eq.s32.totalorder %s13, 1
      %p124 = por %p122, %p123
      %p125 = scmp.ne.s32.totalorder %s117, %s120
      %p126 = scmp.eq.s32.totalorder %s13, 0
      %p127 = por %p125, %p126
      %p128 = scmp.ne.s32.totalorder %s117, %s120
      %p129 = scmp.eq.s32.totalorder %s18, 1
      %p130 = por %p128, %p129
      %p131 = scmp.ne.s32.totalorder %s120, %s121
      %p132 = scmp.eq.s32.totalorder %s18, 0
      %p133 = por %p131, %p132
      %p134 = scmp.ne.s32.totalorder %s120, %s121
      %p135 = scmp.eq.s32.totalorder %s19, 1
      %p136 = por %p134, %p135
      %p138 = scmp.ne.s32.totalorder %s121, %s137
      %p139 = scmp.eq.s32.totalorder %s19, 0
      %p140 = por %p138, %p139
      %p141 = scmp.le.s32.totalorder 1, %s13
      %p142 = scmp.lt.s32.totalorder %s13, 3
      %p143 = pnand %p141, %p142
      %p144 = pneg %p143
      // Predicated region
      $region9: #{tpu_custom_call.1} parent=5 // pred_check
        _
      $region10: #{tpu_custom_call.1} parent=5 // pred_check_branch
        %146 = sbr.rel (%p143) target = $region12
      $region11: #{tpu_custom_call.1} parent=5 // pred_region
        %s147 = ssub.s32 %s13, 1
        // Predicated region
        $region13: #{tpu_custom_call.1} parent=11 // pred_check
          %p148 = pneg %p60
        $region14: #{tpu_custom_call.1} parent=11 // pred_check_branch
          %150 = sbr.rel (%p148) target = $region16
        $region15: #{tpu_custom_call.1} parent=11 // pred_region
          _
        $region16: #{tpu_custom_call.1} parent=11 // pred_fallthru
          _
        // Predicated region
        $region17: #{tpu_custom_call.1} parent=11 // pred_check
          %p151 = pneg %p81
        $region18: #{tpu_custom_call.1} parent=11 // pred_check_branch
          %153 = sbr.rel (%p151) target = $region20
        $region19: #{tpu_custom_call.1} parent=11 // pred_region
          _
        $region20: #{tpu_custom_call.1} parent=11 // pred_fallthru
          _
      $region12: #{tpu_custom_call.1} parent=5 // pred_fallthru
        _
      %p154 = scmp.lt.s32.totalorder %s13, 2
      // Predicated region
      $region21: #{tpu_custom_call.1} parent=5 // pred_check
        %p155 = pneg %p154
      $region22: #{tpu_custom_call.1} parent=5 // pred_check_branch
        %157 = sbr.rel (%p155) target = $region24
      $region23: #{tpu_custom_call.1} parent=5 // pred_region
        // Predicated region
        $region25: #{tpu_custom_call.1} parent=23 // pred_check
          %p158 = pneg %p33
        $region26: #{tpu_custom_call.1} parent=23 // pred_check_branch
          %160 = sbr.rel (%p158) target = $region28
        $region27: #{tpu_custom_call.1} parent=23 // pred_region
          %p161 = scmp.lt.s32.totalorder %s13, 1
          %s162 = scalar_select %p161, %s13, 1
          %s163 = smul.addr %s162, 8
          %s164 = scalar_lea.vmem %s0, %s163
        $region28: #{tpu_custom_call.1} parent=23 // pred_fallthru
          _
        // Predicated region
        $region29: #{tpu_custom_call.1} parent=23 // pred_check
          %p165 = pneg %p101
        $region30: #{tpu_custom_call.1} parent=23 // pred_check_branch
          %167 = sbr.rel (%p165) target = $region32
        $region31: #{tpu_custom_call.1} parent=23 // pred_region
          %p168 = scmp.lt.s32.totalorder %s13, 1
          %s169 = scalar_select %p168, %s13, 1
          %s170 = smul.addr %s169, 8
          %s171 = scalar_lea.vmem %s3, %s170
        $region32: #{tpu_custom_call.1} parent=23 // pred_fallthru
          _
      $region24: #{tpu_custom_call.1} parent=5 // pred_fallthru
        _
      %p172 = scmp.le.s32.totalorder 1, %s13
      %p173 = scmp.lt.s32.totalorder %s13, 3
      %p174 = pnand %p172, %p173
      %p175 = pneg %p174
      // Predicated region
      $region33: #{tpu_custom_call.1} parent=5 // pred_check
        _
      $region34: #{tpu_custom_call.1} parent=5 // pred_check_branch
        %177 = sbr.rel (%p174) target = $region36
      $region35: #{tpu_custom_call.1} parent=5 // pred_region
        %s178 = ssub.s32 %s13, 1
        %p179 = scmp.lt.s32.totalorder %s18, 1
        %s180 = scalar_select %p179, %s18, 1
        %s181 = smul.addr %s180, 8
        %s182 = scalar_lea.vmem %s0, %s181
        %p183 = pneg %p39
        %p184 = pneg %p36
        %p185 = pneg %p60
        %p186 = pneg %p57
        %p187 = pneg %p81
        %p188 = pneg %p78
        %p189 = scmp.lt.s32.totalorder %s18, 1
        %s190 = scalar_select %p189, %s18, 1
        %s191 = smul.addr %s190, 8
        %s192 = scalar_lea.vmem %s3, %s191
        %p193 = pneg %p107
        %p194 = pneg %p104
        %p195 = pneg %p133
        %p196 = pneg %p130
        %s197 = sand.u32 %s120, 1
        %s198 = scalar_lea.sflag [#allocation3], %s197
        %s199 = sand.u32 %s120, 1
        %s200 = smul.addr %s199, 8
        %s201 = scalar_lea.vmem [#allocation2], %s200
        %p202 = scmp.lt.s32.totalorder %s18, 1
        %s203 = scalar_select %p202, %s18, 1
        %s204 = smul.addr %s203, 8
        %s205 = scalar_lea.vmem %s0, %s204
        %p206 = scmp.lt.s32.totalorder %s18, 1
        %s207 = scalar_select %p206, %s18, 1
        %s208 = smul.addr %s207, 8
        %s209 = scalar_lea.vmem %s3, %s208
        %v210 = vld [vmem:[%s205] sm:$0xff]
        %v211 = vld [vmem:[%s1] sm:$0x1]
        %v212 = vld [vmem:[%s2] sm:$0x1]
        %v213 = vld [vmem:[%s209] sm:$0xff]
        %v215 = vlaneseq
        %v216 = vshrl.u32 %v215, 7
        %v217 = vsub.s32 0, %v216
        %v218 = vrot.slane %v211, %v217
        %221 = vset.pattern.permute.xlu0 0
        %222 = vperm.xlu0 %221, %v213
        %v223 = vpop.permute.xlu0 %222
        %225 = vset.pattern.permute.xlu0 1
        %226 = vperm.xlu0 %225, %v213
        %v227 = vpop.permute.xlu0 %226
        %229 = vset.pattern.permute.xlu0 2
        %230 = vperm.xlu0 %229, %v213
        %v231 = vpop.permute.xlu0 %230
        %233 = vset.pattern.permute.xlu0 3
        %234 = vperm.xlu0 %233, %v213
        %v235 = vpop.permute.xlu0 %234
        %v237 = vmul.f32 %v235, %v218
        %v238 = vadd.f32 %v237, %v231
        %v239 = vmul.f32 %v238, %v218
        %v240 = vadd.f32 %v239, %v227
        %v241 = vmul.f32 %v240, %v218
        %v242 = vadd.f32 %v241, %v223
        %v243 = vsub.f32 %v210, %v242
        %v244 = vmul.f32 %v243, %v243
        %v246 = vlaneseq
        %v247 = vshrl.u32 %v246, 7
        %v248 = vsub.s32 0, %v247
        %v249 = vrot.slane %v212, %v248
        %v251 = vmul.f32 %v249, %v244
        %252 = vadd.xlane.f32.xlu0 %v251
        %v253 = vpop.xlane.xlu0 %252
        %v254 = vmax.f32 %v253, 0.0
        %v255 = vrsqrt.pop %v254
        %v256 = vmul.f32 %v254, %v255
        %vm257 = vcmp.eq.f32.partialorder %v254, inf
        %v258 = vsel %vm257, %v254, %v256
        %vm259 = vcmp.eq.f32.partialorder %v254, 0.0
        %v260 = vand.u32 %v254, 2147483648
        %v261 = vsel %vm259, %v260, %v258
        %262 = vst [vmem:[%s201] sm:$0xff] %v261
        %s263 = sand.u32 %s120, 1
        %s264 = scalar_lea.sflag [#allocation3], %s263
        %s265 = sand.u32 %s120, 1
        %s266 = smul.addr %s265, 8
        %s267 = scalar_lea.vmem [#allocation2], %s266
        // Predicated region
        $region37: #{tpu_custom_call.1} parent=35 // pred_check
          %p268 = pneg %p130
        $region38: #{tpu_custom_call.1} parent=35 // pred_check_branch
          %270 = sbr.rel (%p268) target = $region40
        $region39: #{tpu_custom_call.1} parent=35 // pred_region
          %s272 = ssub.s32 128, 128
          %273 = vsyncadd %s264, %s272
          %s274 = smul.addr %s18, 128
          %s275 = scalar_lea.hbm %s4, %s274
          %s277 = sshll.u32 %s267, 4
          %s278 = int_to_ptr.vmem [resolvable:$true] %s277
          %280 = dma.vmem_to_hbm [thread:$0]  %s278, 128, %s275, %s264
        $region40: #{tpu_custom_call.1} parent=35 // pred_fallthru
          _
      $region36: #{tpu_custom_call.1} parent=5 // pred_fallthru
        _
      %p281 = scmp.le.s32.totalorder 2, %s13
      // Predicated region
      $region41: #{tpu_custom_call.1} parent=5 // pred_check
        %p282 = pneg %p281
      $region42: #{tpu_custom_call.1} parent=5 // pred_check_branch
        %284 = sbr.rel (%p282) target = $region44
      $region43: #{tpu_custom_call.1} parent=5 // pred_region
        %s285 = ssub.s32 %s13, 2
        // Predicated region
        $region45: #{tpu_custom_call.1} parent=43 // pred_check
          %p286 = pneg %p136
        $region46: #{tpu_custom_call.1} parent=43 // pred_check_branch
          %288 = sbr.rel (%p286) target = $region48
        $region47: #{tpu_custom_call.1} parent=43 // pred_region
          %s289 = sand.u32 %s121, 1
          %s290 = scalar_lea.sflag [#allocation3], %s289
          %s291 = sand.u32 %s121, 1
          %s292 = smul.addr %s291, 8
          %s293 = scalar_lea.vmem [#allocation2], %s292
          %294 = dma.done %s290, 128
        $region48: #{tpu_custom_call.1} parent=43 // pred_fallthru
          _
      $region44: #{tpu_custom_call.1} parent=5 // pred_fallthru
        _
    $region6: #{tpu_custom_call.1} parent=1 // loop_footer
      %s17 = sadd.s32 1, %s13
    $region7: #{tpu_custom_call.1} parent=1 // loop_footer_branch
      %12 = sbr.rel target = $region3
    $region8: #{tpu_custom_call.1} parent=1 // loop_exit
      _
    %295 = vsyncpa [#allocation3], 1
    %s296 = scalar_lea.sflag [#allocation3], 1
    %297 = vsyncpa %s296, 1

</llo_original>
